<compile_context>
chip_gen: v6e
topology: v6e:2x2x1
jax: 0.10.0
libtpu: 0.0.40
codegen_flags: <defaults>
</compile_context>

<pallas_src>
import functools

import jax
import jax.numpy as jnp
from jax.experimental import pallas as pl
from jax.experimental.pallas import tpu as pltpu


_LANE = 128
_MAX_TILE = 512  # default row / reduction tile for the propagation kernels

_CPARAMS = pltpu.CompilerParams(
    dimension_semantics=("parallel", "arbitrary"))


def _round_up(v, m):
    return -(-v // m) * m


def _pick_tile(n, max_tile=_MAX_TILE):
    """Return (tile, padded) with padded % tile == 0, tile a multiple of 128."""
    n128 = _round_up(n, _LANE)
    if n128 <= max_tile:
        return n128, n128
    if n128 % max_tile == 0:
        return max_tile, n128
    # Large n: pad up to the big tile (small relative overhead).
    if n128 >= 8 * max_tile:
        return max_tile, _round_up(n128, max_tile)
    # Otherwise use the largest 128-multiple tile dividing the 128-padded size.
    for t in range(max_tile - _LANE, 0, -_LANE):
        if n128 % t == 0:
            return t, n128
    return _LANE, n128


# ----------------------------- kernels --------------------------------------

def _xw_kernel(x_ref, w_ref, o_ref, acc_ref, *, tk):
    """support1[i] = sum_k x[i, k-tile] @ W1[k-tile, :]   (W1 VMEM-resident)."""
    k = pl.program_id(1)

    @pl.when(k == 0)
    def _():
        acc_ref[...] = jnp.zeros_like(acc_ref)

    off = pl.multiple_of(k * tk, tk)
    acc_ref[...] += jnp.dot(x_ref[...], w_ref[pl.ds(off, tk), :],
                            preferred_element_type=jnp.float32)

    @pl.when(k == pl.num_programs(1) - 1)
    def _():
        o_ref[...] = acc_ref[...].astype(o_ref.dtype)


def _prop_relu_w2_kernel(adj_ref, s_ref, w2_ref, o_ref, acc_ref):
    """o[i] = relu(sum_k adj[i, k] @ s[k]) @ W2  (gc1 prop + fused gc2 transform)."""
    k = pl.program_id(1)

    @pl.when(k == 0)
    def _():
        acc_ref[...] = jnp.zeros_like(acc_ref)

    acc_ref[...] += jnp.dot(adj_ref[...], s_ref[...],
                            preferred_element_type=jnp.float32)

    @pl.when(k == pl.num_programs(1) - 1)
    def _():
        h = jnp.maximum(acc_ref[...], 0.0)
        o_ref[...] = jnp.dot(h, w2_ref[...],
                             preferred_element_type=jnp.float32).astype(o_ref.dtype)


def _prop_kernel(adj_ref, s_ref, o_ref, acc_ref):
    """o[i] = sum_k adj[i, k] @ s[k]   (gc2 propagation, identity activation)."""
    k = pl.program_id(1)

    @pl.when(k == 0)
    def _():
        acc_ref[...] = jnp.zeros_like(acc_ref)

    acc_ref[...] += jnp.dot(adj_ref[...], s_ref[...],
                            preferred_element_type=jnp.float32)

    @pl.when(k == pl.num_programs(1) - 1)
    def _():
        o_ref[...] = acc_ref[...].astype(o_ref.dtype)


# ----------------------------- wrappers --------------------------------------

def _pallas_xw(x, w1, *, tm, tk):
    """support1 = x @ W1, emitted in bf16.  W1 stays VMEM-resident."""
    m, f = x.shape
    h = w1.shape[1]
    return pl.pallas_call(
        functools.partial(_xw_kernel, tk=tk),
        out_shape=jax.ShapeDtypeStruct((m, h), jnp.bfloat16),
        grid_spec=pltpu.PrefetchScalarGridSpec(
            num_scalar_prefetch=0,
            grid=(m // tm, f // tk),
            in_specs=[
                pl.BlockSpec((tm, tk), lambda i, k: (i, k)),
                pl.BlockSpec((f, h), lambda i, k: (0, 0)),   # fetched once
            ],
            out_specs=pl.BlockSpec((tm, h), lambda i, k: (i, 0)),
            scratch_shapes=[pltpu.VMEM((tm, h), jnp.float32)],
        ),
        compiler_params=_CPARAMS,
    )(x, w1)


def _pallas_prop_relu_w2(adj, s, w2, *, tm, tk):
    """support2 = relu(adj @ s) @ W2, emitted in bf16."""
    n = adj.shape[0]
    h1 = s.shape[1]
    h2 = w2.shape[1]
    return pl.pallas_call(
        _prop_relu_w2_kernel,
        out_shape=jax.ShapeDtypeStruct((n, h2), jnp.bfloat16),
        grid_spec=pltpu.PrefetchScalarGridSpec(
            num_scalar_prefetch=0,
            grid=(n // tm, n // tk),
            in_specs=[
                pl.BlockSpec((tm, tk), lambda i, k: (i, k)),
                pl.BlockSpec((tk, h1), lambda i, k: (k, 0)),
                pl.BlockSpec((h1, h2), lambda i, k: (0, 0)),  # W2 VMEM-resident
            ],
            out_specs=pl.BlockSpec((tm, h2), lambda i, k: (i, 0)),
            scratch_shapes=[pltpu.VMEM((tm, h1), jnp.float32)],
        ),
        compiler_params=_CPARAMS,
    )(adj, s, w2)


def _pallas_prop(adj, s, *, tm, tk):
    """z = adj @ s, emitted in f32."""
    n = adj.shape[0]
    h = s.shape[1]
    return pl.pallas_call(
        _prop_kernel,
        out_shape=jax.ShapeDtypeStruct((n, h), jnp.float32),
        grid_spec=pltpu.PrefetchScalarGridSpec(
            num_scalar_prefetch=0,
            grid=(n // tm, n // tk),
            in_specs=[
                pl.BlockSpec((tm, tk), lambda i, k: (i, k)),
                pl.BlockSpec((tk, h), lambda i, k: (k, 0)),
            ],
            out_specs=pl.BlockSpec((tm, h), lambda i, k: (i, 0)),
            scratch_shapes=[pltpu.VMEM((tm, h), jnp.float32)],
        ),
        compiler_params=_CPARAMS,
    )(adj, s)


def gcn_model_ae_forward(x, adj, params, *, max_tile=_MAX_TILE):
    """Pallas forward of GCNModelAE.  Returns (z, z, None) like the nn.Module.

    x   : (N, input_feat_dim) node features
    adj : (N, N) (normalized) dense adjacency
    params: {"gc1_weight": (F, H1), "gc2_weight": (H1, H2)}
    """
    x = x.astype(jnp.float32)
    w1 = params["gc1_weight"].astype(jnp.float32)
    w2 = params["gc2_weight"].astype(jnp.float32)

    n, f = x.shape
    h1 = w1.shape[1]
    h2 = w2.shape[1]

    tn, n_pad = _pick_tile(n, max_tile)
    tf, f_pad = _pick_tile(f, max_tile)
    h1_pad = _round_up(max(h1, _LANE), _LANE)
    h2_pad = _round_up(max(h2, _LANE), _LANE)

    # Zero-padding of nodes / features / hidden dims is exact for this
    # computation (zero rows/cols contribute nothing, relu(0)=0).
    x_p = jnp.pad(x, ((0, n_pad - n), (0, f_pad - f)))
    w1_p = jnp.pad(w1, ((0, f_pad - f), (0, h1_pad - h1)))
    w2_p = jnp.pad(w2, ((0, h1_pad - h1), (0, h2_pad - h2)))
    # adj is the dominant HBM stream (read twice) -> bf16.
    adj_p = jnp.pad(adj.astype(jnp.bfloat16), ((0, n_pad - n), (0, n_pad - n)))

    support1 = _pallas_xw(x_p, w1_p, tm=tn, tk=tf)                # (n_pad, 128) bf16
    support2 = _pallas_prop_relu_w2(adj_p, support1, w2_p,
                                    tm=tn, tk=tn)                 # (n_pad, 128) bf16
    z_p = _pallas_prop(adj_p, support2, tm=tn, tk=tn)             # (n_pad, 128) f32

    z = z_p[:n, :h2]
    return z, z, None


# ----------------------------- test driver -----------------------------------

def _xavier_uniform(key, shape):
    limit = jnp.sqrt(6.0 / (shape[0] + shape[1]))
    return jax.random.uniform(key, shape, dtype=jnp.float32,
                              minval=-limit, maxval=limit)


if __name__ == "__main__":
    key = jax.random.PRNGKey(0)
    k_x, k_a, k_w1, k_w2 = jax.random.split(key, 4)

    # Small scGNN-ish shapes (deliberately NOT tile-aligned to exercise the
    # padding paths): 200 cells, 300 genes, hidden dims 64 -> 32.
    N, F, H1, H2 = 200, 300, 64, 32

    x = jax.random.normal(k_x, (N, F), dtype=jnp.float32)

    # Symmetric normalized adjacency with self loops: D^-1/2 (A + I) D^-1/2
    a = (jax.random.uniform(k_a, (N, N)) < 0.05).astype(jnp.float32)
    a = jnp.maximum(a, a.T)
    a = a + jnp.eye(N, dtype=jnp.float32)
    d_inv_sqrt = 1.0 / jnp.sqrt(jnp.sum(a, axis=1))
    adj = a * d_inv_sqrt[:, None] * d_inv_sqrt[None, :]

    params = {
        "gc1_weight": _xavier_uniform(k_w1, (F, H1)),
        "gc2_weight": _xavier_uniform(k_w2, (H1, H2)),
    }

    # Default (large-tile) path: single tile per grid axis at these shapes.
    z, z_dup, none_out = gcn_model_ae_forward(x, adj, params)
    # Small-tile path: exercises the multi-tile reduction / accumulator path.
    z_small, _, _ = gcn_model_ae_forward(x, adj, params, max_tile=128)
    jax.block_until_ready((z, z_dup, z_small))

    # Pure-JAX f32 reference of the PyTorch forward.
    hidden1 = jnp.maximum(adj @ (x @ params["gc1_weight"]), 0.0)
    z_ref = adj @ (hidden1 @ params["gc2_weight"])

    assert z.shape == (N, H2)
    assert z_dup.shape == (N, H2)
    assert none_out is None
    # Tolerance accounts for the bf16 adj / support1 / support2 streams
    # (accumulation is f32); z entries are O(0.1) here.
    assert jnp.allclose(z, z_ref, atol=2e-2, rtol=2e-2)
    assert jnp.allclose(z_dup, z_ref, atol=2e-2, rtol=2e-2)
    assert jnp.allclose(z_small, z_ref, atol=2e-2, rtol=2e-2)

    print("KERNEL_OK")
</pallas_src>

<mosaic_0001>
module attributes {stable_mosaic.version = 11 : i64} {
  func.func @_xw_kernel(%arg0: i32, %arg1: i32, %arg2: memref<256x384xf32, #tpu.memory_space<vmem>>, %arg3: memref<384x128xf32, #tpu.memory_space<vmem>>, %arg4: memref<256x128xbf16, #tpu.memory_space<vmem>>, %arg5: memref<256x128xf32, #tpu.memory_space<vmem>>) attributes {dimension_semantics = [#tpu.dimension_semantics<parallel>, #tpu.dimension_semantics<arbitrary>], iteration_bounds = array<i64: 1, 1>, scalar_prefetch = 0 : i64, scratch_operands = 1 : i64, tpu.core_type = #tpu.core_type<tc>, window_params = [{transform_indices = @transform_0, window_bounds = array<i64: 256, 384>}, {pipeline_mode = #tpu.pipeline_mode<synchronous>, transform_indices = @transform_1, window_bounds = array<i64: 384, 128>}, {transform_indices = @transform_2, window_bounds = array<i64: 256, 128>}]} {
    %c0_i32 = arith.constant 0 : i32
    %0 = arith.cmpi eq, %arg1, %c0_i32 : i32
    %1 = arith.extui %0 : i1 to i32
    %c0_i32_0 = arith.constant 0 : i32
    %2 = arith.cmpi ne, %1, %c0_i32_0 : i32
    scf.if %2 {
      %cst_9 = arith.constant 0.000000e+00 : f32
      %15 = vector.broadcast %cst_9 : f32 to vector<256x128xf32>
      %c0_10 = arith.constant 0 : index
      %c0_11 = arith.constant 0 : index
      %16 = vector.load %arg5[%c0_10, %c0_11] : memref<256x128xf32, #tpu.memory_space<vmem>>, vector<256x128xf32>
      tpu.vector_store %arg5[%c0_10, %c0_11], %15 {strides = array<i32>} : memref<256x128xf32, #tpu.memory_space<vmem>>, vector<256x128xf32>,
    } else {
    }
    %c384_i32 = arith.constant 384 : i32
    %3 = arith.muli %arg1, %c384_i32 : i32
    %4 = tpu.assume_multiple %3, 384 : i32
    %c0 = arith.constant 0 : index
    %c0_1 = arith.constant 0 : index
    %5 = vector.load %arg5[%c0, %c0_1] : memref<256x128xf32, #tpu.memory_space<vmem>>, vector<256x128xf32>
    %c0_2 = arith.constant 0 : index
    %c0_3 = arith.constant 0 : index
    %6 = vector.load %arg2[%c0_2, %c0_3] : memref<256x384xf32, #tpu.memory_space<vmem>>, vector<256x384xf32>
    %7 = arith.index_cast %4 : i32 to index
    %c0_4 = arith.constant 0 : index
    %8 = vector.load %arg3[%7, %c0_4] : memref<384x128xf32, #tpu.memory_space<vmem>>, vector<384x128xf32>
    %cst = arith.constant dense<0.000000e+00> : vector<256x128xf32>
    %9 = tpu.matmul %6, %8, %cst {dimension_numbers = #tpu.dot_dimension_numbers<[1], [0], [0], [1], [0, 0, 1, 1], [], []>} : vector<256x384xf32>, vector<384x128xf32>, vector<256x128xf32> -> vector<256x128xf32>
    %10 = arith.addf %5, %9 : vector<256x128xf32>
    %c0_5 = arith.constant 0 : index
    %c0_6 = arith.constant 0 : index
    %11 = vector.load %arg5[%c0_5, %c0_6] : memref<256x128xf32, #tpu.memory_space<vmem>>, vector<256x128xf32>
    tpu.vector_store %arg5[%c0_5, %c0_6], %10 {strides = array<i32>} : memref<256x128xf32, #tpu.memory_space<vmem>>, vector<256x128xf32>,
    %c0_i32_7 = arith.constant 0 : i32
    %12 = arith.cmpi eq, %arg1, %c0_i32_7 : i32
    %13 = arith.extui %12 : i1 to i32
    %c0_i32_8 = arith.constant 0 : i32
    %14 = arith.cmpi ne, %13, %c0_i32_8 : i32
    scf.if %14 {
      %c0_9 = arith.constant 0 : index
      %c0_10 = arith.constant 0 : index
      %15 = vector.load %arg5[%c0_9, %c0_10] : memref<256x128xf32, #tpu.memory_space<vmem>>, vector<256x128xf32>
      %16 = arith.truncf %15 : vector<256x128xf32> to vector<256x128xbf16>
      %c0_11 = arith.constant 0 : index
      %c0_12 = arith.constant 0 : index
      %17 = vector.load %arg4[%c0_11, %c0_12] : memref<256x128xbf16, #tpu.memory_space<vmem>>, vector<256x128xbf16>
      tpu.vector_store %arg4[%c0_11, %c0_12], %16 {strides = array<i32>} : memref<256x128xbf16, #tpu.memory_space<vmem>>, vector<256x128xbf16>,
    } else {
    }
    return
  }
  func.func @transform_0(%arg0: i32, %arg1: i32) -> (i32, i32) {
    %c0_i32 = arith.constant 0 : i32
    return %arg0, %arg1 : i32, i32
  }
  func.func @transform_1(%arg0: i32, %arg1: i32) -> (i32, i32) {
    %c0_i32 = arith.constant 0 : i32
    %c0_i32_0 = arith.constant 0 : i32
    %c0_i32_1 = arith.constant 0 : i32
    return %c0_i32, %c0_i32_0 : i32, i32
  }
  func.func @transform_2(%arg0: i32, %arg1: i32) -> (i32, i32) {
    %c0_i32 = arith.constant 0 : i32
    %c0_i32_0 = arith.constant 0 : i32
    return %arg0, %c0_i32 : i32, i32
  }
}

</mosaic_0001>

<llo_original>
// kernel: tpu_custom_call.1
$region0: #{tpu_custom_call.1}
  #allocation0 [shape = 'u32[]', space=smem, size = 0x4, offset = 0x4, fixed_abs, tag = 'smem constant byte address 0x4 - core index']
  #allocation1 [shape = 'u32[144,128]{1,0:T(1,128)}', space=vmem, size = 0x12000, scoped, tag = 'internal scratch']
  #allocation2 [shape = 'f32[256,128]{1,0:T(8,128)}', space=vmem, size = 0x20000, scoped, tag = 'scratch operand']
  %s0 = inlined_call_operand.hbm [shape: f32[256,384], index: 0, kind: input, shape index: {}]
  %s1 = inlined_call_operand.hbm [shape: f32[384,128], index: 1, kind: input, shape index: {}]
  %s2 = inlined_call_operand.hbm [shape: bf16[256,128], index: 2, kind: output, shape index: {}]
  %s3 = sld [smem:[#allocation0]]
  $region34: #{tpu_custom_call.1} parent=0
    _
  %s5 = ssub.s32 1, %s3
  %s6 = scalar_select 0, %s5, %s3
  $region1: #{tpu_custom_call.1} parent=0
    #allocation3 [shape = 'u8[393216]{0}', space=vmem, size = 0x60000, scoped, tag = 'input window, operand 0, single buffered']
    #allocation4 [shape = 's32[1]{0}', space=sflag, size = 0x4, scoped, tag = 'scoped memory for tpu_custom_call.1']
    #allocation5 [shape = 's32[1]{0}', space=sflag, size = 0x4, scoped, tag = 'scoped memory for tpu_custom_call.1']
    #allocation6 [shape = 'u8[196608]{0}', space=vmem, size = 0x30000, scoped, tag = 'input window, operand 1, single buffered']
    #allocation7 [shape = 's32[1]{0}', space=sflag, size = 0x4, scoped, tag = 'scoped memory for tpu_custom_call.1']
    #allocation8 [shape = 'u8[65536]{0}', space=vmem, size = 0x10000, scoped, tag = 'output window, operand 0, single buffered']
    %7 = vsyncpa [#allocation4], 0
    %8 = vsyncpa [#allocation7], 0
    %9 = vsyncpa [#allocation5], 0
    // Predicated region
    $region2: #{tpu_custom_call.1} parent=1 // pred_check
      _
    $region3: #{tpu_custom_call.1} parent=1 // pred_check_branch
      %11 = sbr.rel (0) target = $region5
    $region4: #{tpu_custom_call.1} parent=1 // pred_region
      %s13 = ssub.s32 12288, 12288
      %14 = vsyncadd [#allocation4], %s13
      %s15 = sshll.u32 [#allocation3], 4
      %s16 = int_to_ptr.vmem [resolvable:$true] %s15
      %21 = dma.hbm_to_vmem [thread:$0]  %s0, 12288, %s16, [#allocation4], 384, 384, 24
    $region5: #{tpu_custom_call.1} parent=1 // pred_fallthru
      _
    // Predicated region
    $region6: #{tpu_custom_call.1} parent=1 // pred_check
      _
    $region7: #{tpu_custom_call.1} parent=1 // pred_check_branch
      %23 = sbr.rel (0) target = $region9
    $region8: #{tpu_custom_call.1} parent=1 // pred_region
      %s25 = ssub.s32 6144, 6144
      %26 = vsyncadd [#allocation7], %s25
      %s27 = sshll.u32 [#allocation6], 4
      %s28 = int_to_ptr.vmem [resolvable:$true] %s27
      %33 = dma.hbm_to_vmem [thread:$0]  %s1, 6144, %s28, [#allocation7], 128, 128, 8
    $region9: #{tpu_custom_call.1} parent=1 // pred_fallthru
      _
    // Predicated region
    $region10: #{tpu_custom_call.1} parent=1 // pred_check
      _
    $region11: #{tpu_custom_call.1} parent=1 // pred_check_branch
      %35 = sbr.rel (0) target = $region13
    $region12: #{tpu_custom_call.1} parent=1 // pred_region
      %36 = dma.done [#allocation4], 12288
    $region13: #{tpu_custom_call.1} parent=1 // pred_fallthru
      _
    // Predicated region
    $region14: #{tpu_custom_call.1} parent=1 // pred_check
      _
    $region15: #{tpu_custom_call.1} parent=1 // pred_check_branch
      %38 = sbr.rel (0) target = $region17
    $region16: #{tpu_custom_call.1} parent=1 // pred_region
      %39 = dma.done [#allocation7], 6144
    $region17: #{tpu_custom_call.1} parent=1 // pred_fallthru
      _
    %p40 = scmp.eq.s32.totalorder 0, 0
    // Predicated region
    $region18: #{tpu_custom_call.1} parent=1 // pred_check
      %p41 = pneg %p40
    $region19: #{tpu_custom_call.1} parent=1 // pred_check_branch
      %43 = sbr.rel (%p41) target = $region21
    $region20: #{tpu_custom_call.1} parent=1 // pred_region
      %44 = vst [vmem:[#allocation2] sm:$0xff] 0.0
      %45 = vst [vmem:[#allocation2 + $0x8] sm:$0xff] 0.0
      %46 = vst [vmem:[#allocation2 + $0x10] sm:$0xff] 0.0
      %47 = vst [vmem:[#allocation2 + $0x18] sm:$0xff] 0.0
      %48 = vst [vmem:[#allocation2 + $0x20] sm:$0xff] 0.0
      %49 = vst [vmem:[#allocation2 + $0x28] sm:$0xff] 0.0
      %50 = vst [vmem:[#allocation2 + $0x30] sm:$0xff] 0.0
      %51 = vst [vmem:[#allocation2 + $0x38] sm:$0xff] 0.0
      %52 = vst [vmem:[#allocation2 + $0x40] sm:$0xff] 0.0
      %53 = vst [vmem:[#allocation2 + $0x48] sm:$0xff] 0.0
      %54 = vst [vmem:[#allocation2 + $0x50] sm:$0xff] 0.0
      %55 = vst [vmem:[#allocation2 + $0x58] sm:$0xff] 0.0
      %56 = vst [vmem:[#allocation2 + $0x60] sm:$0xff] 0.0
      %57 = vst [vmem:[#allocation2 + $0x68] sm:$0xff] 0.0
      %58 = vst [vmem:[#allocation2 + $0x70] sm:$0xff] 0.0
      %59 = vst [vmem:[#allocation2 + $0x78] sm:$0xff] 0.0
      %60 = vst [vmem:[#allocation2 + $0x80] sm:$0xff] 0.0
      %61 = vst [vmem:[#allocation2 + $0x88] sm:$0xff] 0.0
      %62 = vst [vmem:[#allocation2 + $0x90] sm:$0xff] 0.0
      %63 = vst [vmem:[#allocation2 + $0x98] sm:$0xff] 0.0
      %64 = vst [vmem:[#allocation2 + $0xa0] sm:$0xff] 0.0
      %65 = vst [vmem:[#allocation2 + $0xa8] sm:$0xff] 0.0
      %66 = vst [vmem:[#allocation2 + $0xb0] sm:$0xff] 0.0
      %67 = vst [vmem:[#allocation2 + $0xb8] sm:$0xff] 0.0
      %68 = vst [vmem:[#allocation2 + $0xc0] sm:$0xff] 0.0
      %69 = vst [vmem:[#allocation2 + $0xc8] sm:$0xff] 0.0
      %70 = vst [vmem:[#allocation2 + $0xd0] sm:$0xff] 0.0
      %71 = vst [vmem:[#allocation2 + $0xd8] sm:$0xff] 0.0
      %72 = vst [vmem:[#allocation2 + $0xe0] sm:$0xff] 0.0
      %73 = vst [vmem:[#allocation2 + $0xe8] sm:$0xff] 0.0
      %74 = vst [vmem:[#allocation2 + $0xf0] sm:$0xff] 0.0
      %75 = vst [vmem:[#allocation2 + $0xf8] sm:$0xff] 0.0
    $region21: #{tpu_custom_call.1} parent=1 // pred_fallthru
      _
    %s76 = smul.u32 0, 384
    %v77 = vld [vmem:[#allocation2] sm:$0xff]
    %v78 = vld [vmem:[#allocation2 + $0x8] sm:$0xff]
    %v79 = vld [vmem:[#allocation2 + $0x10] sm:$0xff]
    %v80 = vld [vmem:[#allocation2 + $0x18] sm:$0xff]
    %v81 = vld [vmem:[#allocation2 + $0x20] sm:$0xff]
    %v82 = vld [vmem:[#allocation2 + $0x28] sm:$0xff]
    %v83 = vld [vmem:[#allocation2 + $0x30] sm:$0xff]
    %v84 = vld [vmem:[#allocation2 + $0x38] sm:$0xff]
    %v85 = vld [vmem:[#allocation2 + $0x40] sm:$0xff]
    %v86 = vld [vmem:[#allocation2 + $0x48] sm:$0xff]
    %v87 = vld [vmem:[#allocation2 + $0x50] sm:$0xff]
    %v88 = vld [vmem:[#allocation2 + $0x58] sm:$0xff]
    %v89 = vld [vmem:[#allocation2 + $0x60] sm:$0xff]
    %v90 = vld [vmem:[#allocation2 + $0x68] sm:$0xff]
    %v91 = vld [vmem:[#allocation2 + $0x70] sm:$0xff]
    %v92 = vld [vmem:[#allocation2 + $0x78] sm:$0xff]
    %v93 = vld [vmem:[#allocation2 + $0x80] sm:$0xff]
    %v94 = vld [vmem:[#allocation2 + $0x88] sm:$0xff]
    %v95 = vld [vmem:[#allocation2 + $0x90] sm:$0xff]
    %v96 = vld [vmem:[#allocation2 + $0x98] sm:$0xff]
    %v97 = vld [vmem:[#allocation2 + $0xa0] sm:$0xff]
    %v98 = vld [vmem:[#allocation2 + $0xa8] sm:$0xff]
    %v99 = vld [vmem:[#allocation2 + $0xb0] sm:$0xff]
    %v100 = vld [vmem:[#allocation2 + $0xb8] sm:$0xff]
    %v101 = vld [vmem:[#allocation2 + $0xc0] sm:$0xff]
    %v102 = vld [vmem:[#allocation2 + $0xc8] sm:$0xff]
    %v103 = vld [vmem:[#allocation2 + $0xd0] sm:$0xff]
    %v104 = vld [vmem:[#allocation2 + $0xd8] sm:$0xff]
    %v105 = vld [vmem:[#allocation2 + $0xe0] sm:$0xff]
    %v106 = vld [vmem:[#allocation2 + $0xe8] sm:$0xff]
    %v107 = vld [vmem:[#allocation2 + $0xf0] sm:$0xff]
    %v108 = vld [vmem:[#allocation2 + $0xf8] sm:$0xff]
    %v109 = vld [vmem:[#allocation3] sm:$0xff]
    %v110 = vld [vmem:[#allocation3 + $0x8] sm:$0xff]
    %v111 = vld [vmem:[#allocation3 + $0x10] sm:$0xff]
    %v112 = vld [vmem:[#allocation3 + $0x18] sm:$0xff]
    %v113 = vld [vmem:[#allocation3 + $0x20] sm:$0xff]
    %v114 = vld [vmem:[#allocation3 + $0x28] sm:$0xff]
    %v115 = vld [vmem:[#allocation3 + $0x30] sm:$0xff]
    %v116 = vld [vmem:[#allocation3 + $0x38] sm:$0xff]
    %v117 = vld [vmem:[#allocation3 + $0x40] sm:$0xff]
    %v118 = vld [vmem:[#allocation3 + $0x48] sm:$0xff]
    %v119 = vld [vmem:[#allocation3 + $0x50] sm:$0xff]
    %v120 = vld [vmem:[#allocation3 + $0x58] sm:$0xff]
    %v121 = vld [vmem:[#allocation3 + $0x60] sm:$0xff]
    %v122 = vld [vmem:[#allocation3 + $0x68] sm:$0xff]
    %v123 = vld [vmem:[#allocation3 + $0x70] sm:$0xff]
    %v124 = vld [vmem:[#allocation3 + $0x78] sm:$0xff]
    %v125 = vld [vmem:[#allocation3 + $0x80] sm:$0xff]
    %v126 = vld [vmem:[#allocation3 + $0x88] sm:$0xff]
    %v127 = vld [vmem:[#allocation3 + $0x90] sm:$0xff]
    %v128 = vld [vmem:[#allocation3 + $0x98] sm:$0xff]
    %v129 = vld [vmem:[#allocation3 + $0xa0] sm:$0xff]
    %v130 = vld [vmem:[#allocation3 + $0xa8] sm:$0xff]
    %v131 = vld [vmem:[#allocation3 + $0xb0] sm:$0xff]
    %v132 = vld [vmem:[#allocation3 + $0xb8] sm:$0xff]
    %v133 = vld [vmem:[#allocation3 + $0xc0] sm:$0xff]
    %v134 = vld [vmem:[#allocation3 + $0xc8] sm:$0xff]
    %v135 = vld [vmem:[#allocation3 + $0xd0] sm:$0xff]
    %v136 = vld [vmem:[#allocation3 + $0xd8] sm:$0xff]
    %v137 = vld [vmem:[#allocation3 + $0xe0] sm:$0xff]
    %v138 = vld [vmem:[#allocation3 + $0xe8] sm:$0xff]
    %v139 = vld [vmem:[#allocation3 + $0xf0] sm:$0xff]
    %v140 = vld [vmem:[#allocation3 + $0xf8] sm:$0xff]
    %v141 = vld [vmem:[#allocation3 + $0x100] sm:$0xff]
    %v142 = vld [vmem:[#allocation3 + $0x108] sm:$0xff]
    %v143 = vld [vmem:[#allocation3 + $0x110] sm:$0xff]
    %v144 = vld [vmem:[#allocation3 + $0x118] sm:$0xff]
    %v145 = vld [vmem:[#allocation3 + $0x120] sm:$0xff]
    %v146 = vld [vmem:[#allocation3 + $0x128] sm:$0xff]
    %v147 = vld [vmem:[#allocation3 + $0x130] sm:$0xff]
    %v148 = vld [vmem:[#allocation3 + $0x138] sm:$0xff]
    %v149 = vld [vmem:[#allocation3 + $0x140] sm:$0xff]
    %v150 = vld [vmem:[#allocation3 + $0x148] sm:$0xff]
    %v151 = vld [vmem:[#allocation3 + $0x150] sm:$0xff]
    %v152 = vld [vmem:[#allocation3 + $0x158] sm:$0xff]
    %v153 = vld [vmem:[#allocation3 + $0x160] sm:$0xff]
    %v154 = vld [vmem:[#allocation3 + $0x168] sm:$0xff]
    %v155 = vld [vmem:[#allocation3 + $0x170] sm:$0xff]
    %v156 = vld [vmem:[#allocation3 + $0x178] sm:$0xff]
    %v157 = vld [vmem:[#allocation3 + $0x180] sm:$0xff]
    %v158 = vld [vmem:[#allocation3 + $0x188] sm:$0xff]
    %v159 = vld [vmem:[#allocation3 + $0x190] sm:$0xff]
    %v160 = vld [vmem:[#allocation3 + $0x198] sm:$0xff]
    %v161 = vld [vmem:[#allocation3 + $0x1a0] sm:$0xff]
    %v162 = vld [vmem:[#allocation3 + $0x1a8] sm:$0xff]
    %v163 = vld [vmem:[#allocation3 + $0x1b0] sm:$0xff]
    %v164 = vld [vmem:[#allocation3 + $0x1b8] sm:$0xff]
    %v165 = vld [vmem:[#allocation3 + $0x1c0] sm:$0xff]
    %v166 = vld [vmem:[#allocation3 + $0x1c8] sm:$0xff]
    %v167 = vld [vmem:[#allocation3 + $0x1d0] sm:$0xff]
    %v168 = vld [vmem:[#allocation3 + $0x1d8] sm:$0xff]
    %v169 = vld [vmem:[#allocation3 + $0x1e0] sm:$0xff]
    %v170 = vld [vmem:[#allocation3 + $0x1e8] sm:$0xff]
    %v171 = vld [vmem:[#allocation3 + $0x1f0] sm:$0xff]
    %v172 = vld [vmem:[#allocation3 + $0x1f8] sm:$0xff]
    %v173 = vld [vmem:[#allocation3 + $0x200] sm:$0xff]
    %v174 = vld [vmem:[#allocation3 + $0x208] sm:$0xff]
    %v175 = vld [vmem:[#allocation3 + $0x210] sm:$0xff]
    %v176 = vld [vmem:[#allocation3 + $0x218] sm:$0xff]
    %v177 = vld [vmem:[#allocation3 + $0x220] sm:$0xff]
    %v178 = vld [vmem:[#allocation3 + $0x228] sm:$0xff]
    %v179 = vld [vmem:[#allocation3 + $0x230] sm:$0xff]
    %v180 = vld [vmem:[#allocation3 + $0x238] sm:$0xff]
    %v181 = vld [vmem:[#allocation3 + $0x240] sm:$0xff]
    %v182 = vld [vmem:[#allocation3 + $0x248] sm:$0xff]
    %v183 = vld [vmem:[#allocation3 + $0x250] sm:$0xff]
    %v184 = vld [vmem:[#allocation3 + $0x258] sm:$0xff]
    %v185 = vld [vmem:[#allocation3 + $0x260] sm:$0xff]
    %v186 = vld [vmem:[#allocation3 + $0x268] sm:$0xff]
    %v187 = vld [vmem:[#allocation3 + $0x270] sm:$0xff]
    %v188 = vld [vmem:[#allocation3 + $0x278] sm:$0xff]
    %v189 = vld [vmem:[#allocation3 + $0x280] sm:$0xff]
    %v190 = vld [vmem:[#allocation3 + $0x288] sm:$0xff]
    %v191 = vld [vmem:[#allocation3 + $0x290] sm:$0xff]
    %v192 = vld [vmem:[#allocation3 + $0x298] sm:$0xff]
    %v193 = vld [vmem:[#allocation3 + $0x2a0] sm:$0xff]
    %v194 = vld [vmem:[#allocation3 + $0x2a8] sm:$0xff]
    %v195 = vld [vmem:[#allocation3 + $0x2b0] sm:$0xff]
    %v196 = vld [vmem:[#allocation3 + $0x2b8] sm:$0xff]
    %v197 = vld [vmem:[#allocation3 + $0x2c0] sm:$0xff]
    %v198 = vld [vmem:[#allocation3 + $0x2c8] sm:$0xff]
    %v199 = vld [vmem:[#allocation3 + $0x2d0] sm:$0xff]
    %v200 = vld [vmem:[#allocation3 + $0x2d8] sm:$0xff]
    %v201 = vld [vmem:[#allocation3 + $0x2e0] sm:$0xff]
    %v202 = vld [vmem:[#allocation3 + $0x2e8] sm:$0xff]
    %v203 = vld [vmem:[#allocation3 + $0x2f0] sm:$0xff]
    %v204 = vld [vmem:[#allocation3 + $0x2f8] sm:$0xff]
    %s205 = scalar_lea.vmem [#allocation6], %s76
    %v206 = vld [vmem:[%s205] sm:$0xff]
    %v207 = vld [vmem:[%s205 + $0x8] sm:$0xff]
    %v208 = vld [vmem:[%s205 + $0x10] sm:$0xff]
    %v209 = vld [vmem:[%s205 + $0x18] sm:$0xff]
    %v210 = vld [vmem:[%s205 + $0x20] sm:$0xff]
    %v211 = vld [vmem:[%s205 + $0x28] sm:$0xff]
    %v212 = vld [vmem:[%s205 + $0x30] sm:$0xff]
    %v213 = vld [vmem:[%s205 + $0x38] sm:$0xff]
    %v214 = vld [vmem:[%s205 + $0x40] sm:$0xff]
    %v215 = vld [vmem:[%s205 + $0x48] sm:$0xff]
    %v216 = vld [vmem:[%s205 + $0x50] sm:$0xff]
    %v217 = vld [vmem:[%s205 + $0x58] sm:$0xff]
    %v218 = vld [vmem:[%s205 + $0x60] sm:$0xff]
    %v219 = vld [vmem:[%s205 + $0x68] sm:$0xff]
    %v220 = vld [vmem:[%s205 + $0x70] sm:$0xff]
    %v221 = vld [vmem:[%s205 + $0x78] sm:$0xff]
    %v222 = vld [vmem:[%s205 + $0x80] sm:$0xff]
    %v223 = vld [vmem:[%s205 + $0x88] sm:$0xff]
    %v224 = vld [vmem:[%s205 + $0x90] sm:$0xff]
    %v225 = vld [vmem:[%s205 + $0x98] sm:$0xff]
    %v226 = vld [vmem:[%s205 + $0xa0] sm:$0xff]
    %v227 = vld [vmem:[%s205 + $0xa8] sm:$0xff]
    %v228 = vld [vmem:[%s205 + $0xb0] sm:$0xff]
    %v229 = vld [vmem:[%s205 + $0xb8] sm:$0xff]
    %v230 = vld [vmem:[%s205 + $0xc0] sm:$0xff]
    %v231 = vld [vmem:[%s205 + $0xc8] sm:$0xff]
    %v232 = vld [vmem:[%s205 + $0xd0] sm:$0xff]
    %v233 = vld [vmem:[%s205 + $0xd8] sm:$0xff]
    %v234 = vld [vmem:[%s205 + $0xe0] sm:$0xff]
    %v235 = vld [vmem:[%s205 + $0xe8] sm:$0xff]
    %v236 = vld [vmem:[%s205 + $0xf0] sm:$0xff]
    %v237 = vld [vmem:[%s205 + $0xf8] sm:$0xff]
    %v238 = vld [vmem:[%s205 + $0x100] sm:$0xff]
    %v239 = vld [vmem:[%s205 + $0x108] sm:$0xff]
    %v240 = vld [vmem:[%s205 + $0x110] sm:$0xff]
    %v241 = vld [vmem:[%s205 + $0x118] sm:$0xff]
    %v242 = vld [vmem:[%s205 + $0x120] sm:$0xff]
    %v243 = vld [vmem:[%s205 + $0x128] sm:$0xff]
    %v244 = vld [vmem:[%s205 + $0x130] sm:$0xff]
    %v245 = vld [vmem:[%s205 + $0x138] sm:$0xff]
    %v246 = vld [vmem:[%s205 + $0x140] sm:$0xff]
    %v247 = vld [vmem:[%s205 + $0x148] sm:$0xff]
    %v248 = vld [vmem:[%s205 + $0x150] sm:$0xff]
    %v249 = vld [vmem:[%s205 + $0x158] sm:$0xff]
    %v250 = vld [vmem:[%s205 + $0x160] sm:$0xff]
    %v251 = vld [vmem:[%s205 + $0x168] sm:$0xff]
    %v252 = vld [vmem:[%s205 + $0x170] sm:$0xff]
    %v253 = vld [vmem:[%s205 + $0x178] sm:$0xff]
    %254 = vmatprep.subr.mxu0 0.0
    %255 = vmatpush1.msra.mxu0 %v221
    %256 = vmatprep.subr.mxu0 0.0
    %257 = vmatpush1.msra.mxu0 %v220
    %258 = vmatprep.subr.mxu0 0.0
    %259 = vmatpush1.msra.mxu0 %v219
    %260 = vmatprep.subr.mxu0 0.0
    %261 = vmatpush1.msra.mxu0 %v218
    %262 = vmatprep.subr.mxu0 0.0
    %263 = vmatpush1.msra.mxu0 %v217
    %264 = vmatprep.subr.mxu0 0.0
    %265 = vmatpush1.msra.mxu0 %v216
    %266 = vmatprep.subr.mxu0 0.0
    %267 = vmatpush1.msra.mxu0 %v215
    %268 = vmatprep.subr.mxu0 0.0
    %269 = vmatpush1.msra.mxu0 %v214
    %270 = vmatprep.subr.mxu0 0.0
    %271 = vmatpush1.msra.mxu0 %v213
    %272 = vmatprep.subr.mxu0 0.0
    %273 = vmatpush1.msra.mxu0 %v212
    %274 = vmatprep.subr.mxu0 0.0
    %275 = vmatpush1.msra.mxu0 %v211
    %276 = vmatprep.subr.mxu0 0.0
    %277 = vmatpush1.msra.mxu0 %v210
    %278 = vmatprep.subr.mxu0 0.0
    %279 = vmatpush1.msra.mxu0 %v209
    %280 = vmatprep.subr.mxu0 0.0
    %281 = vmatpush1.msra.mxu0 %v208
    %282 = vmatprep.subr.mxu0 0.0
    %283 = vmatpush1.msra.mxu0 %v207
    %284 = vmatprep.subr.mxu0 0.0
    %285 = vmatpush1.msra.mxu0 %v206
    %286 = vmatprep.subr.mxu0 0.0
    %287 = vmatpush2.msra.mxu0 %v237
    %288 = vmatprep.subr.mxu0 0.0
    %289 = vmatpush2.msra.mxu0 %v236
    %290 = vmatprep.subr.mxu0 0.0
    %291 = vmatpush2.msra.mxu0 %v235
    %292 = vmatprep.subr.mxu0 0.0
    %293 = vmatpush2.msra.mxu0 %v234
    %294 = vmatprep.subr.mxu0 0.0
    %295 = vmatpush2.msra.mxu0 %v233
    %296 = vmatprep.subr.mxu0 0.0
    %297 = vmatpush2.msra.mxu0 %v232
    %298 = vmatprep.subr.mxu0 0.0
    %299 = vmatpush2.msra.mxu0 %v231
    %300 = vmatprep.subr.mxu0 0.0
    %301 = vmatpush2.msra.mxu0 %v230
    %302 = vmatprep.subr.mxu0 0.0
    %303 = vmatpush2.msra.mxu0 %v229
    %304 = vmatprep.subr.mxu0 0.0
    %305 = vmatpush2.msra.mxu0 %v228
    %306 = vmatprep.subr.mxu0 0.0
    %307 = vmatpush2.msra.mxu0 %v227
    %308 = vmatprep.subr.mxu0 0.0
    %309 = vmatpush2.msra.mxu0 %v226
    %310 = vmatprep.subr.mxu0 0.0
    %311 = vmatpush2.msra.mxu0 %v225
    %312 = vmatprep.subr.mxu0 0.0
    %313 = vmatpush2.msra.mxu0 %v224
    %314 = vmatprep.subr.mxu0 0.0
    %315 = vmatpush2.msra.mxu0 %v223
    %316 = vmatprep.subr.mxu0 0.0
    %317 = vmatpush2.msra.mxu0 %v222
    %318 = vmatprep.mubr.f32.mxu0 %v110
    %319 = vmatmul.mubr.f32.gmra.mxu0 %v109
    %v320 = vpop.f32.mrf.mxu0
    %v321 = vadd.f32 0.0, %v320
    %v322 = vpop.f32.mrf.mxu0
    %323 = vmatprep.mubr.f32.mxu0 %v113
    %324 = vmatmul.mubr.f32.gmra.mxu0 %v112
    %v325 = vpop.f32.mrf.mxu0
    %v326 = vadd.f32 0.0, %v325
    %v327 = vpop.f32.mrf.mxu0
    %328 = vmatprep.mubr.f32.mxu0 %v116
    %329 = vmatmul.mubr.f32.gmra.mxu0 %v115
    %v330 = vpop.f32.mrf.mxu0
    %v331 = vadd.f32 0.0, %v330
    %v332 = vpop.f32.mrf.mxu0
    %333 = vmatprep.mubr.f32.mxu0 %v119
    %334 = vmatmul.mubr.f32.gmra.mxu0 %v118
    %v335 = vpop.f32.mrf.mxu0
    %v336 = vadd.f32 0.0, %v335
    %v337 = vpop.f32.mrf.mxu0
    %338 = vmatprep.mubr.f32.mxu0 %v122
    %339 = vmatmul.mubr.f32.gmra.mxu0 %v121
    %v340 = vpop.f32.mrf.mxu0
    %v341 = vadd.f32 0.0, %v340
    %v342 = vpop.f32.mrf.mxu0
    %343 = vmatprep.mubr.f32.mxu0 %v125
    %344 = vmatmul.mubr.f32.gmra.mxu0 %v124
    %v345 = vpop.f32.mrf.mxu0
    %v346 = vadd.f32 0.0, %v345
    %v347 = vpop.f32.mrf.mxu0
    %348 = vmatprep.mubr.f32.mxu0 %v128
    %349 = vmatmul.mubr.f32.gmra.mxu0 %v127
    %v350 = vpop.f32.mrf.mxu0
    %v351 = vadd.f32 0.0, %v350
    %v352 = vpop.f32.mrf.mxu0
    %353 = vmatprep.mubr.f32.mxu0 %v131
    %354 = vmatmul.mubr.f32.gmra.mxu0 %v130
    %v355 = vpop.f32.mrf.mxu0
    %v356 = vadd.f32 0.0, %v355
    %v357 = vpop.f32.mrf.mxu0
    %358 = vmatprep.mubr.f32.mxu0 %v134
    %359 = vmatmul.mubr.f32.gmra.mxu0 %v133
    %v360 = vpop.f32.mrf.mxu0
    %v361 = vadd.f32 0.0, %v360
    %v362 = vpop.f32.mrf.mxu0
    %363 = vmatprep.mubr.f32.mxu0 %v137
    %364 = vmatmul.mubr.f32.gmra.mxu0 %v136
    %v365 = vpop.f32.mrf.mxu0
    %v366 = vadd.f32 0.0, %v365
    %v367 = vpop.f32.mrf.mxu0
    %368 = vmatprep.mubr.f32.mxu0 %v140
    %369 = vmatmul.mubr.f32.gmra.mxu0 %v139
    %v370 = vpop.f32.mrf.mxu0
    %v371 = vadd.f32 0.0, %v370
    %v372 = vpop.f32.mrf.mxu0
    %373 = vmatprep.mubr.f32.mxu0 %v143
    %374 = vmatmul.mubr.f32.gmra.mxu0 %v142
    %v375 = vpop.f32.mrf.mxu0
    %v376 = vadd.f32 0.0, %v375
    %v377 = vpop.f32.mrf.mxu0
    %378 = vmatprep.mubr.f32.mxu0 %v146
    %379 = vmatmul.mubr.f32.gmra.mxu0 %v145
    %v380 = vpop.f32.mrf.mxu0
    %v381 = vadd.f32 0.0, %v380
    %v382 = vpop.f32.mrf.mxu0
    %383 = vmatprep.mubr.f32.mxu0 %v149
    %384 = vmatmul.mubr.f32.gmra.mxu0 %v148
    %v385 = vpop.f32.mrf.mxu0
    %v386 = vadd.f32 0.0, %v385
    %v387 = vpop.f32.mrf.mxu0
    %388 = vmatprep.mubr.f32.mxu0 %v152
    %389 = vmatmul.mubr.f32.gmra.mxu0 %v151
    %v390 = vpop.f32.mrf.mxu0
    %v391 = vadd.f32 0.0, %v390
    %v392 = vpop.f32.mrf.mxu0
    %393 = vmatprep.mubr.f32.mxu0 %v155
    %394 = vmatmul.mubr.f32.gmra.mxu0 %v154
    %v395 = vpop.f32.mrf.mxu0
    %v396 = vadd.f32 0.0, %v395
    %v397 = vpop.f32.mrf.mxu0
    %398 = vmatprep.mubr.f32.mxu0 %v158
    %399 = vmatmul.mubr.f32.gmra.mxu0 %v157
    %v400 = vpop.f32.mrf.mxu0
    %v401 = vadd.f32 0.0, %v400
    %v402 = vpop.f32.mrf.mxu0
    %403 = vmatprep.mubr.f32.mxu0 %v161
    %404 = vmatmul.mubr.f32.gmra.mxu0 %v160
    %v405 = vpop.f32.mrf.mxu0
    %v406 = vadd.f32 0.0, %v405
    %v407 = vpop.f32.mrf.mxu0
    %408 = vmatprep.mubr.f32.mxu0 %v164
    %409 = vmatmul.mubr.f32.gmra.mxu0 %v163
    %v410 = vpop.f32.mrf.mxu0
    %v411 = vadd.f32 0.0, %v410
    %v412 = vpop.f32.mrf.mxu0
    %413 = vmatprep.mubr.f32.mxu0 %v167
    %414 = vmatmul.mubr.f32.gmra.mxu0 %v166
    %v415 = vpop.f32.mrf.mxu0
    %v416 = vadd.f32 0.0, %v415
    %v417 = vpop.f32.mrf.mxu0
    %418 = vmatprep.mubr.f32.mxu0 %v170
    %419 = vmatmul.mubr.f32.gmra.mxu0 %v169
    %v420 = vpop.f32.mrf.mxu0
    %v421 = vadd.f32 0.0, %v420
    %v422 = vpop.f32.mrf.mxu0
    %423 = vmatprep.mubr.f32.mxu0 %v173
    %424 = vmatmul.mubr.f32.gmra.mxu0 %v172
    %v425 = vpop.f32.mrf.mxu0
    %v426 = vadd.f32 0.0, %v425
    %v427 = vpop.f32.mrf.mxu0
    %428 = vmatprep.mubr.f32.mxu0 %v176
    %429 = vmatmul.mubr.f32.gmra.mxu0 %v175
    %v430 = vpop.f32.mrf.mxu0
    %v431 = vadd.f32 0.0, %v430
    %v432 = vpop.f32.mrf.mxu0
    %433 = vmatprep.mubr.f32.mxu0 %v179
    %434 = vmatmul.mubr.f32.gmra.mxu0 %v178
    %v435 = vpop.f32.mrf.mxu0
    %v436 = vadd.f32 0.0, %v435
    %v437 = vpop.f32.mrf.mxu0
    %438 = vmatprep.mubr.f32.mxu0 %v182
    %439 = vmatmul.mubr.f32.gmra.mxu0 %v181
    %v440 = vpop.f32.mrf.mxu0
    %v441 = vadd.f32 0.0, %v440
    %v442 = vpop.f32.mrf.mxu0
    %443 = vmatprep.mubr.f32.mxu0 %v185
    %444 = vmatmul.mubr.f32.gmra.mxu0 %v184
    %v445 = vpop.f32.mrf.mxu0
    %v446 = vadd.f32 0.0, %v445
    %v447 = vpop.f32.mrf.mxu0
    %448 = vmatprep.mubr.f32.mxu0 %v188
    %449 = vmatmul.mubr.f32.gmra.mxu0 %v187
    %v450 = vpop.f32.mrf.mxu0
    %v451 = vadd.f32 0.0, %v450
    %v452 = vpop.f32.mrf.mxu0
    %453 = vmatprep.mubr.f32.mxu0 %v191
    %454 = vmatmul.mubr.f32.gmra.mxu0 %v190
    %v455 = vpop.f32.mrf.mxu0
    %v456 = vadd.f32 0.0, %v455
    %v457 = vpop.f32.mrf.mxu0
    %458 = vmatprep.mubr.f32.mxu0 %v194
    %459 = vmatmul.mubr.f32.gmra.mxu0 %v193
    %v460 = vpop.f32.mrf.mxu0
    %v461 = vadd.f32 0.0, %v460
    %v462 = vpop.f32.mrf.mxu0
    %463 = vmatprep.mubr.f32.mxu0 %v197
    %464 = vmatmul.mubr.f32.gmra.mxu0 %v196
    %v465 = vpop.f32.mrf.mxu0
    %v466 = vadd.f32 0.0, %v465
    %v467 = vpop.f32.mrf.mxu0
    %468 = vmatprep.mubr.f32.mxu0 %v200
    %469 = vmatmul.mubr.f32.gmra.mxu0 %v199
    %v470 = vpop.f32.mrf.mxu0
    %v471 = vadd.f32 0.0, %v470
    %v472 = vpop.f32.mrf.mxu0
    %473 = vmatprep.mubr.f32.mxu0 %v203
    %474 = vmatmul.mubr.f32.gmra.mxu0 %v202
    %v475 = vpop.f32.mrf.mxu0
    %v476 = vadd.f32 0.0, %v475
    %v477 = vpop.f32.mrf.mxu0
    %478 = vdwg.mxu0
    %479 = vmatprep.subr.mxu0 0.0
    %480 = vmatpush1.msra.mxu0 %v253
    %481 = vmatprep.subr.mxu0 0.0
    %482 = vmatpush1.msra.mxu0 %v252
    %483 = vmatprep.subr.mxu0 0.0
    %484 = vmatpush1.msra.mxu0 %v251
    %485 = vmatprep.subr.mxu0 0.0
    %486 = vmatpush1.msra.mxu0 %v250
    %487 = vmatprep.subr.mxu0 0.0
    %488 = vmatpush1.msra.mxu0 %v249
    %489 = vmatprep.subr.mxu0 0.0
    %490 = vmatpush1.msra.mxu0 %v248
    %491 = vmatprep.subr.mxu0 0.0
    %492 = vmatpush1.msra.mxu0 %v247
    %493 = vmatprep.subr.mxu0 0.0
    %494 = vmatpush1.msra.mxu0 %v246
    %495 = vmatprep.subr.mxu0 0.0
    %496 = vmatpush1.msra.mxu0 %v245
    %497 = vmatprep.subr.mxu0 0.0
    %498 = vmatpush1.msra.mxu0 %v244
    %499 = vmatprep.subr.mxu0 0.0
    %500 = vmatpush1.msra.mxu0 %v243
    %501 = vmatprep.subr.mxu0 0.0
    %502 = vmatpush1.msra.mxu0 %v242
    %503 = vmatprep.subr.mxu0 0.0
    %504 = vmatpush1.msra.mxu0 %v241
    %505 = vmatprep.subr.mxu0 0.0
    %506 = vmatpush1.msra.mxu0 %v240
    %507 = vmatprep.subr.mxu0 0.0
    %508 = vmatpush1.msra.mxu0 %v239
    %509 = vmatprep.subr.mxu0 0.0
    %510 = vmatpush1.msra.mxu0 %v238
    %511 = vmatprep.subr.mxu0 0.0
    %512 = vmatpush2.msra.mxu0 0.0
    %513 = vmatprep.subr.mxu0 0.0
    %514 = vmatpush2.msra.mxu0 0.0
    %515 = vmatprep.subr.mxu0 0.0
    %516 = vmatpush2.msra.mxu0 0.0
    %517 = vmatprep.subr.mxu0 0.0
    %518 = vmatpush2.msra.mxu0 0.0
    %519 = vmatprep.subr.mxu0 0.0
    %520 = vmatpush2.msra.mxu0 0.0
    %521 = vmatprep.subr.mxu0 0.0
    %522 = vmatpush2.msra.mxu0 0.0
    %523 = vmatprep.subr.mxu0 0.0
    %524 = vmatpush2.msra.mxu0 0.0
    %525 = vmatprep.subr.mxu0 0.0
    %526 = vmatpush2.msra.mxu0 0.0
    %527 = vmatprep.subr.mxu0 0.0
    %528 = vmatpush2.msra.mxu0 0.0
    %529 = vmatprep.subr.mxu0 0.0
    %530 = vmatpush2.msra.mxu0 0.0
    %531 = vmatprep.subr.mxu0 0.0
    %532 = vmatpush2.msra.mxu0 0.0
    %533 = vmatprep.subr.mxu0 0.0
    %534 = vmatpush2.msra.mxu0 0.0
    %535 = vmatprep.subr.mxu0 0.0
    %536 = vmatpush2.msra.mxu0 0.0
    %537 = vmatprep.subr.mxu0 0.0
    %538 = vmatpush2.msra.mxu0 0.0
    %539 = vmatprep.subr.mxu0 0.0
    %540 = vmatpush2.msra.mxu0 0.0
    %541 = vmatprep.subr.mxu0 0.0
    %542 = vmatpush2.msra.mxu0 0.0
    %543 = vmatprep.mubr.f32.mxu0 0.0
    %544 = vmatmul.mubr.f32.gmra.mxu0 %v111
    %v545 = vpop.f32.mrf.mxu0
    %v546 = vadd.f32 %v321, %v545
    %v547 = vpop.f32.mrf.mxu0
    %548 = vmatprep.mubr.f32.mxu0 0.0
    %549 = vmatmul.mubr.f32.gmra.mxu0 %v114
    %v550 = vpop.f32.mrf.mxu0
    %v551 = vadd.f32 %v326, %v550
    %v552 = vpop.f32.mrf.mxu0
    %553 = vmatprep.mubr.f32.mxu0 0.0
    %554 = vmatmul.mubr.f32.gmra.mxu0 %v117
    %v555 = vpop.f32.mrf.mxu0
    %v556 = vadd.f32 %v331, %v555
    %v557 = vpop.f32.mrf.mxu0
    %558 = vmatprep.mubr.f32.mxu0 0.0
    %559 = vmatmul.mubr.f32.gmra.mxu0 %v120
    %v560 = vpop.f32.mrf.mxu0
    %v561 = vadd.f32 %v336, %v560
    %v562 = vpop.f32.mrf.mxu0
    %563 = vmatprep.mubr.f32.mxu0 0.0
    %564 = vmatmul.mubr.f32.gmra.mxu0 %v123
    %v565 = vpop.f32.mrf.mxu0
    %v566 = vadd.f32 %v341, %v565
    %v567 = vpop.f32.mrf.mxu0
    %568 = vmatprep.mubr.f32.mxu0 0.0
    %569 = vmatmul.mubr.f32.gmra.mxu0 %v126
    %v570 = vpop.f32.mrf.mxu0
    %v571 = vadd.f32 %v346, %v570
    %v572 = vpop.f32.mrf.mxu0
    %573 = vmatprep.mubr.f32.mxu0 0.0
    %574 = vmatmul.mubr.f32.gmra.mxu0 %v129
    %v575 = vpop.f32.mrf.mxu0
    %v576 = vadd.f32 %v351, %v575
    %v577 = vpop.f32.mrf.mxu0
    %578 = vmatprep.mubr.f32.mxu0 0.0
    %579 = vmatmul.mubr.f32.gmra.mxu0 %v132
    %v580 = vpop.f32.mrf.mxu0
    %v581 = vadd.f32 %v356, %v580
    %v582 = vpop.f32.mrf.mxu0
    %583 = vmatprep.mubr.f32.mxu0 0.0
    %584 = vmatmul.mubr.f32.gmra.mxu0 %v135
    %v585 = vpop.f32.mrf.mxu0
    %v586 = vadd.f32 %v361, %v585
    %v587 = vpop.f32.mrf.mxu0
    %588 = vmatprep.mubr.f32.mxu0 0.0
    %589 = vmatmul.mubr.f32.gmra.mxu0 %v138
    %v590 = vpop.f32.mrf.mxu0
    %v591 = vadd.f32 %v366, %v590
    %v592 = vpop.f32.mrf.mxu0
    %593 = vmatprep.mubr.f32.mxu0 0.0
    %594 = vmatmul.mubr.f32.gmra.mxu0 %v141
    %v595 = vpop.f32.mrf.mxu0
    %v596 = vadd.f32 %v371, %v595
    %v597 = vpop.f32.mrf.mxu0
    %598 = vmatprep.mubr.f32.mxu0 0.0
    %599 = vmatmul.mubr.f32.gmra.mxu0 %v144
    %v600 = vpop.f32.mrf.mxu0
    %v601 = vadd.f32 %v376, %v600
    %v602 = vpop.f32.mrf.mxu0
    %603 = vmatprep.mubr.f32.mxu0 0.0
    %604 = vmatmul.mubr.f32.gmra.mxu0 %v147
    %v605 = vpop.f32.mrf.mxu0
    %v606 = vadd.f32 %v381, %v605
    %v607 = vpop.f32.mrf.mxu0
    %608 = vmatprep.mubr.f32.mxu0 0.0
    %609 = vmatmul.mubr.f32.gmra.mxu0 %v150
    %v610 = vpop.f32.mrf.mxu0
    %v611 = vadd.f32 %v386, %v610
    %v612 = vpop.f32.mrf.mxu0
    %613 = vmatprep.mubr.f32.mxu0 0.0
    %614 = vmatmul.mubr.f32.gmra.mxu0 %v153
    %v615 = vpop.f32.mrf.mxu0
    %v616 = vadd.f32 %v391, %v615
    %v617 = vpop.f32.mrf.mxu0
    %618 = vmatprep.mubr.f32.mxu0 0.0
    %619 = vmatmul.mubr.f32.gmra.mxu0 %v156
    %v620 = vpop.f32.mrf.mxu0
    %v621 = vadd.f32 %v396, %v620
    %v622 = vpop.f32.mrf.mxu0
    %623 = vmatprep.mubr.f32.mxu0 0.0
    %624 = vmatmul.mubr.f32.gmra.mxu0 %v159
    %v625 = vpop.f32.mrf.mxu0
    %v626 = vadd.f32 %v401, %v625
    %v627 = vpop.f32.mrf.mxu0
    %628 = vmatprep.mubr.f32.mxu0 0.0
    %629 = vmatmul.mubr.f32.gmra.mxu0 %v162
    %v630 = vpop.f32.mrf.mxu0
    %v631 = vadd.f32 %v406, %v630
    %v632 = vpop.f32.mrf.mxu0
    %633 = vmatprep.mubr.f32.mxu0 0.0
    %634 = vmatmul.mubr.f32.gmra.mxu0 %v165
    %v635 = vpop.f32.mrf.mxu0
    %v636 = vadd.f32 %v411, %v635
    %v637 = vpop.f32.mrf.mxu0
    %638 = vmatprep.mubr.f32.mxu0 0.0
    %639 = vmatmul.mubr.f32.gmra.mxu0 %v168
    %v640 = vpop.f32.mrf.mxu0
    %v641 = vadd.f32 %v416, %v640
    %v642 = vpop.f32.mrf.mxu0
    %643 = vmatprep.mubr.f32.mxu0 0.0
    %644 = vmatmul.mubr.f32.gmra.mxu0 %v171
    %v645 = vpop.f32.mrf.mxu0
    %v646 = vadd.f32 %v421, %v645
    %v647 = vpop.f32.mrf.mxu0
    %648 = vmatprep.mubr.f32.mxu0 0.0
    %649 = vmatmul.mubr.f32.gmra.mxu0 %v174
    %v650 = vpop.f32.mrf.mxu0
    %v651 = vadd.f32 %v426, %v650
    %v652 = vpop.f32.mrf.mxu0
    %653 = vmatprep.mubr.f32.mxu0 0.0
    %654 = vmatmul.mubr.f32.gmra.mxu0 %v177
    %v655 = vpop.f32.mrf.mxu0
    %v656 = vadd.f32 %v431, %v655
    %v657 = vpop.f32.mrf.mxu0
    %658 = vmatprep.mubr.f32.mxu0 0.0
    %659 = vmatmul.mubr.f32.gmra.mxu0 %v180
    %v660 = vpop.f32.mrf.mxu0
    %v661 = vadd.f32 %v436, %v660
    %v662 = vpop.f32.mrf.mxu0
    %663 = vmatprep.mubr.f32.mxu0 0.0
    %664 = vmatmul.mubr.f32.gmra.mxu0 %v183
    %v665 = vpop.f32.mrf.mxu0
    %v666 = vadd.f32 %v441, %v665
    %v667 = vpop.f32.mrf.mxu0
    %668 = vmatprep.mubr.f32.mxu0 0.0
    %669 = vmatmul.mubr.f32.gmra.mxu0 %v186
    %v670 = vpop.f32.mrf.mxu0
    %v671 = vadd.f32 %v446, %v670
    %v672 = vpop.f32.mrf.mxu0
    %673 = vmatprep.mubr.f32.mxu0 0.0
    %674 = vmatmul.mubr.f32.gmra.mxu0 %v189
    %v675 = vpop.f32.mrf.mxu0
    %v676 = vadd.f32 %v451, %v675
    %v677 = vpop.f32.mrf.mxu0
    %678 = vmatprep.mubr.f32.mxu0 0.0
    %679 = vmatmul.mubr.f32.gmra.mxu0 %v192
    %v680 = vpop.f32.mrf.mxu0
    %v681 = vadd.f32 %v456, %v680
    %v682 = vpop.f32.mrf.mxu0
    %683 = vmatprep.mubr.f32.mxu0 0.0
    %684 = vmatmul.mubr.f32.gmra.mxu0 %v195
    %v685 = vpop.f32.mrf.mxu0
    %v686 = vadd.f32 %v461, %v685
    %v687 = vpop.f32.mrf.mxu0
    %688 = vmatprep.mubr.f32.mxu0 0.0
    %689 = vmatmul.mubr.f32.gmra.mxu0 %v198
    %v690 = vpop.f32.mrf.mxu0
    %v691 = vadd.f32 %v466, %v690
    %v692 = vpop.f32.mrf.mxu0
    %693 = vmatprep.mubr.f32.mxu0 0.0
    %694 = vmatmul.mubr.f32.gmra.mxu0 %v201
    %v695 = vpop.f32.mrf.mxu0
    %v696 = vadd.f32 %v471, %v695
    %v697 = vpop.f32.mrf.mxu0
    %698 = vmatprep.mubr.f32.mxu0 0.0
    %699 = vmatmul.mubr.f32.gmra.mxu0 %v204
    %v700 = vpop.f32.mrf.mxu0
    %v701 = vadd.f32 %v476, %v700
    %v702 = vpop.f32.mrf.mxu0
    %703 = vdwg.mxu0
    %v704 = vadd.f32 %v77, %v546
    %v705 = vadd.f32 %v78, %v551
    %v706 = vadd.f32 %v79, %v556
    %v707 = vadd.f32 %v80, %v561
    %v708 = vadd.f32 %v81, %v566
    %v709 = vadd.f32 %v82, %v571
    %v710 = vadd.f32 %v83, %v576
    %v711 = vadd.f32 %v84, %v581
    %v712 = vadd.f32 %v85, %v586
    %v713 = vadd.f32 %v86, %v591
    %v714 = vadd.f32 %v87, %v596
    %v715 = vadd.f32 %v88, %v601
    %v716 = vadd.f32 %v89, %v606
    %v717 = vadd.f32 %v90, %v611
    %v718 = vadd.f32 %v91, %v616
    %v719 = vadd.f32 %v92, %v621
    %v720 = vadd.f32 %v93, %v626
    %v721 = vadd.f32 %v94, %v631
    %v722 = vadd.f32 %v95, %v636
    %v723 = vadd.f32 %v96, %v641
    %v724 = vadd.f32 %v97, %v646
    %v725 = vadd.f32 %v98, %v651
    %v726 = vadd.f32 %v99, %v656
    %v727 = vadd.f32 %v100, %v661
    %v728 = vadd.f32 %v101, %v666
    %v729 = vadd.f32 %v102, %v671
    %v730 = vadd.f32 %v103, %v676
    %v731 = vadd.f32 %v104, %v681
    %v732 = vadd.f32 %v105, %v686
    %v733 = vadd.f32 %v106, %v691
    %v734 = vadd.f32 %v107, %v696
    %v735 = vadd.f32 %v108, %v701
    %736 = vst [vmem:[#allocation2] sm:$0xff] %v704
    %737 = vst [vmem:[#allocation2 + $0x8] sm:$0xff] %v705
    %738 = vst [vmem:[#allocation2 + $0x10] sm:$0xff] %v706
    %739 = vst [vmem:[#allocation2 + $0x18] sm:$0xff] %v707
    %740 = vst [vmem:[#allocation2 + $0x20] sm:$0xff] %v708
    %741 = vst [vmem:[#allocation2 + $0x28] sm:$0xff] %v709
    %742 = vst [vmem:[#allocation2 + $0x30] sm:$0xff] %v710
    %743 = vst [vmem:[#allocation2 + $0x38] sm:$0xff] %v711
    %744 = vst [vmem:[#allocation2 + $0x40] sm:$0xff] %v712
    %745 = vst [vmem:[#allocation2 + $0x48] sm:$0xff] %v713
    %746 = vst [vmem:[#allocation2 + $0x50] sm:$0xff] %v714
    %747 = vst [vmem:[#allocation2 + $0x58] sm:$0xff] %v715
    %748 = vst [vmem:[#allocation2 + $0x60] sm:$0xff] %v716
    %749 = vst [vmem:[#allocation2 + $0x68] sm:$0xff] %v717
    %750 = vst [vmem:[#allocation2 + $0x70] sm:$0xff] %v718
    %751 = vst [vmem:[#allocation2 + $0x78] sm:$0xff] %v719
    %752 = vst [vmem:[#allocation2 + $0x80] sm:$0xff] %v720
    %753 = vst [vmem:[#allocation2 + $0x88] sm:$0xff] %v721
    %754 = vst [vmem:[#allocation2 + $0x90] sm:$0xff] %v722
    %755 = vst [vmem:[#allocation2 + $0x98] sm:$0xff] %v723
    %756 = vst [vmem:[#allocation2 + $0xa0] sm:$0xff] %v724
    %757 = vst [vmem:[#allocation2 + $0xa8] sm:$0xff] %v725
    %758 = vst [vmem:[#allocation2 + $0xb0] sm:$0xff] %v726
    %759 = vst [vmem:[#allocation2 + $0xb8] sm:$0xff] %v727
    %760 = vst [vmem:[#allocation2 + $0xc0] sm:$0xff] %v728
    %761 = vst [vmem:[#allocation2 + $0xc8] sm:$0xff] %v729
    %762 = vst [vmem:[#allocation2 + $0xd0] sm:$0xff] %v730
    %763 = vst [vmem:[#allocation2 + $0xd8] sm:$0xff] %v731
    %764 = vst [vmem:[#allocation2 + $0xe0] sm:$0xff] %v732
    %765 = vst [vmem:[#allocation2 + $0xe8] sm:$0xff] %v733
    %766 = vst [vmem:[#allocation2 + $0xf0] sm:$0xff] %v734
    %767 = vst [vmem:[#allocation2 + $0xf8] sm:$0xff] %v735
    // Predicated region
    $region22: #{tpu_custom_call.1} parent=1 // pred_check
      %p768 = pneg %p40
    $region23: #{tpu_custom_call.1} parent=1 // pred_check_branch
      %770 = sbr.rel (%p768) target = $region25
    $region24: #{tpu_custom_call.1} parent=1 // pred_region
      %v771 = vld [vmem:[#allocation2] sm:$0xff]
      %v772 = vld [vmem:[#allocation2 + $0x8] sm:$0xff]
      %v773 = vld [vmem:[#allocation2 + $0x10] sm:$0xff]
      %v774 = vld [vmem:[#allocation2 + $0x18] sm:$0xff]
      %v775 = vld [vmem:[#allocation2 + $0x20] sm:$0xff]
      %v776 = vld [vmem:[#allocation2 + $0x28] sm:$0xff]
      %v777 = vld [vmem:[#allocation2 + $0x30] sm:$0xff]
      %v778 = vld [vmem:[#allocation2 + $0x38] sm:$0xff]
      %v779 = vld [vmem:[#allocation2 + $0x40] sm:$0xff]
      %v780 = vld [vmem:[#allocation2 + $0x48] sm:$0xff]
      %v781 = vld [vmem:[#allocation2 + $0x50] sm:$0xff]
      %v782 = vld [vmem:[#allocation2 + $0x58] sm:$0xff]
      %v783 = vld [vmem:[#allocation2 + $0x60] sm:$0xff]
      %v784 = vld [vmem:[#allocation2 + $0x68] sm:$0xff]
      %v785 = vld [vmem:[#allocation2 + $0x70] sm:$0xff]
      %v786 = vld [vmem:[#allocation2 + $0x78] sm:$0xff]
      %v787 = vld [vmem:[#allocation2 + $0x80] sm:$0xff]
      %v788 = vld [vmem:[#allocation2 + $0x88] sm:$0xff]
      %v789 = vld [vmem:[#allocation2 + $0x90] sm:$0xff]
      %v790 = vld [vmem:[#allocation2 + $0x98] sm:$0xff]
      %v791 = vld [vmem:[#allocation2 + $0xa0] sm:$0xff]
      %v792 = vld [vmem:[#allocation2 + $0xa8] sm:$0xff]
      %v793 = vld [vmem:[#allocation2 + $0xb0] sm:$0xff]
      %v794 = vld [vmem:[#allocation2 + $0xb8] sm:$0xff]
      %v795 = vld [vmem:[#allocation2 + $0xc0] sm:$0xff]
      %v796 = vld [vmem:[#allocation2 + $0xc8] sm:$0xff]
      %v797 = vld [vmem:[#allocation2 + $0xd0] sm:$0xff]
      %v798 = vld [vmem:[#allocation2 + $0xd8] sm:$0xff]
      %v799 = vld [vmem:[#allocation2 + $0xe0] sm:$0xff]
      %v800 = vld [vmem:[#allocation2 + $0xe8] sm:$0xff]
      %v801 = vld [vmem:[#allocation2 + $0xf0] sm:$0xff]
      %v802 = vld [vmem:[#allocation2 + $0xf8] sm:$0xff]
      %v803 = vpack.c.bf16 %v772, %v771
      %v804 = vpack.c.bf16 %v774, %v773
      %v805 = vpack.c.bf16 %v776, %v775
      %v806 = vpack.c.bf16 %v778, %v777
      %v807 = vpack.c.bf16 %v780, %v779
      %v808 = vpack.c.bf16 %v782, %v781
      %v809 = vpack.c.bf16 %v784, %v783
      %v810 = vpack.c.bf16 %v786, %v785
      %v811 = vpack.c.bf16 %v788, %v787
      %v812 = vpack.c.bf16 %v790, %v789
      %v813 = vpack.c.bf16 %v792, %v791
      %v814 = vpack.c.bf16 %v794, %v793
      %v815 = vpack.c.bf16 %v796, %v795
      %v816 = vpack.c.bf16 %v798, %v797
      %v817 = vpack.c.bf16 %v800, %v799
      %v818 = vpack.c.bf16 %v802, %v801
      %v835 = vunpack.c.l.b16 %v803
      %v836 = vunpack.c.h.b16 %v803
      %v837 = vunpack.c.l.b16 %v804
      %v838 = vunpack.c.h.b16 %v804
      %v839 = vunpack.c.l.b16 %v805
      %v840 = vunpack.c.h.b16 %v805
      %v841 = vunpack.c.l.b16 %v806
      %v842 = vunpack.c.h.b16 %v806
      %v843 = vunpack.c.l.b16 %v807
      %v844 = vunpack.c.h.b16 %v807
      %v845 = vunpack.c.l.b16 %v808
      %v846 = vunpack.c.h.b16 %v808
      %v847 = vunpack.c.l.b16 %v809
      %v848 = vunpack.c.h.b16 %v809
      %v849 = vunpack.c.l.b16 %v810
      %v850 = vunpack.c.h.b16 %v810
      %v851 = vunpack.c.l.b16 %v811
      %v852 = vunpack.c.h.b16 %v811
      %v853 = vunpack.c.l.b16 %v812
      %v854 = vunpack.c.h.b16 %v812
      %v855 = vunpack.c.l.b16 %v813
      %v856 = vunpack.c.h.b16 %v813
      %v857 = vunpack.c.l.b16 %v814
      %v858 = vunpack.c.h.b16 %v814
      %v859 = vunpack.c.l.b16 %v815
      %v860 = vunpack.c.h.b16 %v815
      %v861 = vunpack.c.l.b16 %v816
      %v862 = vunpack.c.h.b16 %v816
      %v863 = vunpack.c.l.b16 %v817
      %v864 = vunpack.c.h.b16 %v817
      %v865 = vunpack.c.l.b16 %v818
      %v866 = vunpack.c.h.b16 %v818
      %v867 = vpack.c.b16 %v835, %v835
      %v868 = vpack.c.b16 %v836, %v836
      %v869 = vpack.c.b16 %v837, %v837
      %v870 = vpack.c.b16 %v838, %v838
      %v871 = vpack.c.b16 %v839, %v839
      %v872 = vpack.c.b16 %v840, %v840
      %v873 = vpack.c.b16 %v841, %v841
      %v874 = vpack.c.b16 %v842, %v842
      %v875 = vpack.c.b16 %v843, %v843
      %v876 = vpack.c.b16 %v844, %v844
      %v877 = vpack.c.b16 %v845, %v845
      %v878 = vpack.c.b16 %v846, %v846
      %v879 = vpack.c.b16 %v847, %v847
      %v880 = vpack.c.b16 %v848, %v848
      %v881 = vpack.c.b16 %v849, %v849
      %v882 = vpack.c.b16 %v850, %v850
      %v883 = vpack.c.b16 %v851, %v851
      %v884 = vpack.c.b16 %v852, %v852
      %v885 = vpack.c.b16 %v853, %v853
      %v886 = vpack.c.b16 %v854, %v854
      %v887 = vpack.c.b16 %v855, %v855
      %v888 = vpack.c.b16 %v856, %v856
      %v889 = vpack.c.b16 %v857, %v857
      %v890 = vpack.c.b16 %v858, %v858
      %v891 = vpack.c.b16 %v859, %v859
      %v892 = vpack.c.b16 %v860, %v860
      %v893 = vpack.c.b16 %v861, %v861
      %v894 = vpack.c.b16 %v862, %v862
      %v895 = vpack.c.b16 %v863, %v863
      %v896 = vpack.c.b16 %v864, %v864
      %v897 = vpack.c.b16 %v865, %v865
      %v898 = vpack.c.b16 %v866, %v866
      %931 = vst [vmem:[#allocation8] sm:$0xf] %v867
      %932 = vst [vmem:[#allocation8 + $0x4] sm:$0xf] %v868
      %933 = vst [vmem:[#allocation8 + $0x8] sm:$0xf] %v869
      %934 = vst [vmem:[#allocation8 + $0xc] sm:$0xf] %v870
      %935 = vst [vmem:[#allocation8 + $0x10] sm:$0xf] %v871
      %936 = vst [vmem:[#allocation8 + $0x14] sm:$0xf] %v872
      %937 = vst [vmem:[#allocation8 + $0x18] sm:$0xf] %v873
      %938 = vst [vmem:[#allocation8 + $0x1c] sm:$0xf] %v874
      %939 = vst [vmem:[#allocation8 + $0x20] sm:$0xf] %v875
      %940 = vst [vmem:[#allocation8 + $0x24] sm:$0xf] %v876
      %941 = vst [vmem:[#allocation8 + $0x28] sm:$0xf] %v877
      %942 = vst [vmem:[#allocation8 + $0x2c] sm:$0xf] %v878
      %943 = vst [vmem:[#allocation8 + $0x30] sm:$0xf] %v879
      %944 = vst [vmem:[#allocation8 + $0x34] sm:$0xf] %v880
      %945 = vst [vmem:[#allocation8 + $0x38] sm:$0xf] %v881
      %946 = vst [vmem:[#allocation8 + $0x3c] sm:$0xf] %v882
      %947 = vst [vmem:[#allocation8 + $0x40] sm:$0xf] %v883
      %948 = vst [vmem:[#allocation8 + $0x44] sm:$0xf] %v884
      %949 = vst [vmem:[#allocation8 + $0x48] sm:$0xf] %v885
      %950 = vst [vmem:[#allocation8 + $0x4c] sm:$0xf] %v886
      %951 = vst [vmem:[#allocation8 + $0x50] sm:$0xf] %v887
      %952 = vst [vmem:[#allocation8 + $0x54] sm:$0xf] %v888
      %953 = vst [vmem:[#allocation8 + $0x58] sm:$0xf] %v889
      %954 = vst [vmem:[#allocation8 + $0x5c] sm:$0xf] %v890
      %955 = vst [vmem:[#allocation8 + $0x60] sm:$0xf] %v891
      %956 = vst [vmem:[#allocation8 + $0x64] sm:$0xf] %v892
      %957 = vst [vmem:[#allocation8 + $0x68] sm:$0xf] %v893
      %958 = vst [vmem:[#allocation8 + $0x6c] sm:$0xf] %v894
      %959 = vst [vmem:[#allocation8 + $0x70] sm:$0xf] %v895
      %960 = vst [vmem:[#allocation8 + $0x74] sm:$0xf] %v896
      %961 = vst [vmem:[#allocation8 + $0x78] sm:$0xf] %v897
      %962 = vst [vmem:[#allocation8 + $0x7c] sm:$0xf] %v898
    $region25: #{tpu_custom_call.1} parent=1 // pred_fallthru
      _
    // Predicated region
    $region26: #{tpu_custom_call.1} parent=1 // pred_check
      _
    $region27: #{tpu_custom_call.1} parent=1 // pred_check_branch
      %964 = sbr.rel (0) target = $region29
    $region28: #{tpu_custom_call.1} parent=1 // pred_region
      %s966 = ssub.s32 2048, 2048
      %967 = vsyncadd [#allocation5], %s966
      %s968 = sshll.u32 [#allocation8], 4
      %s969 = int_to_ptr.vmem [resolvable:$true] %s968
      %974 = dma.vmem_to_hbm [thread:$0]  %s969, 2048, %s2, [#allocation5], 64, 64, 4
    $region29: #{tpu_custom_call.1} parent=1 // pred_fallthru
      _
    // Predicated region
    $region30: #{tpu_custom_call.1} parent=1 // pred_check
      _
    $region31: #{tpu_custom_call.1} parent=1 // pred_check_branch
      %976 = sbr.rel (0) target = $region33
    $region32: #{tpu_custom_call.1} parent=1 // pred_region
      %977 = dma.done [#allocation5], 2048
    $region33: #{tpu_custom_call.1} parent=1 // pred_fallthru
      _
    %978 = vsyncpa [#allocation4], 1
    %979 = vsyncpa [#allocation7], 1
    %980 = vsyncpa [#allocation5], 1

</llo_original>
